<compile_context>
chip_gen: v7x
topology: tpu7x:2x2x1
jax: 0.10.0
libtpu: 0.0.40
codegen_flags: <defaults>
</compile_context>

<pallas_src>
import jax
import jax.numpy as jnp
from jax.experimental import pallas as pl
from jax.experimental.pallas import tpu as pltpu

_EPS = 1e-12  # torch.nn.functional.normalize default eps


def _cdiv(a, b):
    return (a + b - 1) // b


def _vmem_budgets():
    """(tile_budget_bytes, vmem_limit_bytes) per TPU generation."""
    try:
        cap = pltpu.get_tpu_info().vmem_capacity_bytes
    except Exception:  # query unavailable -> conservative (v7x-safe) defaults
        cap = 64 * 1024 * 1024
    if cap >= 100 * 1024 * 1024:           # v5e / v6e: 128 MiB physical VMEM
        return 48 * 1024 * 1024, 64 * 1024 * 1024
    return 16 * 1024 * 1024, 32 * 1024 * 1024   # v7x: 64 MiB physical VMEM


def _row_alignment(dtype):
    # Sublane packing: 8 rows for 32-bit, 16 for 16-bit, 32 for 8-bit dtypes.
    itemsize = jnp.dtype(dtype).itemsize
    return {4: 8, 2: 16, 1: 32}.get(itemsize, 8)


# ---------------------------------------------------------------------------
# Last-dim (lane-axis) normalization
# ---------------------------------------------------------------------------

def _l2norm_kernel(x_ref, o_ref):
    # x_ref/o_ref: (TM, D) tile in VMEM; normalize each row along D (lanes).
    x = x_ref[...]
    xf = x.astype(jnp.float32)
    ss = jnp.sum(xf * xf, axis=-1, keepdims=True)            # (TM, 1), f32 accum
    # max(sqrt(ss), eps) == sqrt(max(ss, eps^2)); rsqrt runs on the EUP slot.
    inv = jax.lax.rsqrt(jnp.maximum(ss, _EPS * _EPS))
    if jnp.dtype(x_ref.dtype).itemsize < 4:
        # Scale in the input dtype: the full-tile f32 upcast is only live for
        # the reduction, halving intermediate pressure for bf16.
        # (On v5e the bf16 multiply is upcast internally by Mosaic; still correct.)
        o_ref[...] = x * inv.astype(x_ref.dtype)
    else:
        o_ref[...] = (xf * inv).astype(o_ref.dtype)


def _pick_tile_rows(r, d, dtype, budget_bytes, max_tile_rows=None):
    """Largest row-tile (multiple of the sublane alignment) within the budget,
    shaped so the grid has >= 2 (even) steps when there's enough work."""
    align = _row_alignment(dtype)
    itemsize = jnp.dtype(dtype).itemsize
    # Double-buffered input tile + double-buffered output tile ...
    bytes_per_row = 2 * 2 * d * itemsize
    # ... plus the in-kernel f32 upcast for sub-32-bit dtypes (not double-buffered).
    if itemsize < 4:
        bytes_per_row += 4 * d
    rows_budget = (budget_bytes // max(bytes_per_row, 1)) // align * align
    rows_budget = max(align, rows_budget)

    r_aligned = _cdiv(r, align) * align
    rows_budget = min(rows_budget, r_aligned)
    if max_tile_rows is not None:
        rows_budget = max(align, min(rows_budget, (max_tile_rows // align) * align))

    rows = rows_budget
    if r_aligned >= 2 * align:
        # Prefer an even step count so v7x's 2 TensorCores stay balanced.
        steps = max(_cdiv(r_aligned, rows_budget), 2)
        if steps % 2:
            steps += 1
        units = r_aligned // align
        rows = max(align, min(_cdiv(units, steps) * align, rows_budget))
    return rows


def l2_normalize(x, *, max_tile_rows=None):
    """L2-normalize `x` along its last axis (p=2), matching F.normalize."""
    orig_shape = x.shape
    d = orig_shape[-1]
    x2 = x.reshape(-1, d)          # contiguous reshape: no HBM copy
    r = x2.shape[0]

    budget_bytes, limit_bytes = _vmem_budgets()
    tile_rows = _pick_tile_rows(r, d, x.dtype, budget_bytes, max_tile_rows)
    grid = (_cdiv(r, tile_rows),)  # ragged last block is masked by Pallas

    # TODO(synk): for very large D (a single `align`-row tile not fitting the
    # per-generation budget) a D-tiled two-pass (sum-of-squares accumulator
    # over an "arbitrary" D grid axis, then a scaling pass) would be needed.
    itemsize = jnp.dtype(x.dtype).itemsize
    out = pl.pallas_call(
        _l2norm_kernel,
        out_shape=jax.ShapeDtypeStruct((r, d), x.dtype),
        grid_spec=pltpu.PrefetchScalarGridSpec(
            num_scalar_prefetch=0,
            grid=grid,
            in_specs=[pl.BlockSpec((tile_rows, d), lambda i: (i, 0))],
            out_specs=pl.BlockSpec((tile_rows, d), lambda i: (i, 0)),
        ),
        compiler_params=pltpu.CompilerParams(
            dimension_semantics=("parallel",),   # rows independent -> megacore
            vmem_limit_bytes=limit_bytes,
        ),
        cost_estimate=pl.CostEstimate(
            flops=3 * r * d,
            transcendentals=r,
            bytes_accessed=2 * r * d * itemsize,
        ),
    )(x2)

    return out.reshape(orig_shape)


# ---------------------------------------------------------------------------
# Middle-dim (sublane-axis) normalization: dim != -1 with no transposes.
# x is reshaped (view) to (pre, N, post); reduce over N (axis=-2).
# ---------------------------------------------------------------------------

def _l2norm_mid_kernel(x_ref, o_ref):
    # x_ref/o_ref: (1, N, TP) tile; normalize along axis=-2 (sublanes via XLU).
    x = x_ref[...]
    xf = x.astype(jnp.float32)
    ss = jnp.sum(xf * xf, axis=-2, keepdims=True)             # (1, 1, TP)
    inv = jax.lax.rsqrt(jnp.maximum(ss, _EPS * _EPS))
    if jnp.dtype(x_ref.dtype).itemsize < 4:
        o_ref[...] = x * inv.astype(x_ref.dtype)
    else:
        o_ref[...] = (xf * inv).astype(o_ref.dtype)


def _pick_tile_cols(post, n, dtype, budget_bytes):
    """Lane-tile width (multiple of 128, or full `post`) within the budget."""
    itemsize = jnp.dtype(dtype).itemsize
    bytes_per_col = 2 * 2 * n * itemsize
    if itemsize < 4:
        bytes_per_col += 4 * n
    cols = (budget_bytes // max(bytes_per_col, 1)) // 128 * 128
    if cols == 0:
        # TODO(synk): N-tiled two-pass for extremely large normalized dims.
        cols = 128
    if post <= cols:
        return post                       # full last dim is always legal
    return cols                           # multiple of 128; cdiv grid masks the rest


def _l2_normalize_middle(x3):
    pre, n, post = x3.shape
    budget_bytes, limit_bytes = _vmem_budgets()
    tp = _pick_tile_cols(post, n, x3.dtype, budget_bytes)
    grid = (pre, _cdiv(post, tp))

    itemsize = jnp.dtype(x3.dtype).itemsize
    total = pre * n * post
    return pl.pallas_call(
        _l2norm_mid_kernel,
        out_shape=jax.ShapeDtypeStruct((pre, n, post), x3.dtype),
        grid_spec=pltpu.PrefetchScalarGridSpec(
            num_scalar_prefetch=0,
            grid=grid,
            in_specs=[pl.BlockSpec((1, n, tp), lambda i, j: (i, 0, j))],
            out_specs=pl.BlockSpec((1, n, tp), lambda i, j: (i, 0, j)),
        ),
        compiler_params=pltpu.CompilerParams(
            dimension_semantics=("parallel", "parallel"),
            vmem_limit_bytes=limit_bytes,
        ),
        cost_estimate=pl.CostEstimate(
            flops=3 * total,
            transcendentals=pre * post,
            bytes_accessed=2 * total * itemsize,
        ),
    )(x3)


# ---------------------------------------------------------------------------
# Module wrapper
# ---------------------------------------------------------------------------

class L2Norm:
    """JAX/Pallas equivalent of the PyTorch L2Norm module."""

    def __init__(self, dim=-1):
        self.dim = dim

    def __call__(self, x, *, max_tile_rows=None):
        dim = self.dim if self.dim >= 0 else x.ndim + self.dim
        if dim == x.ndim - 1:
            return l2_normalize(x, max_tile_rows=max_tile_rows)
        # Non-last-dim: pure reshape (no copy) to (pre, N, post) and a fused
        # sublane-axis reduction kernel -> 1x read + 1x write, no transposes.
        shape = x.shape
        pre = 1
        for s in shape[:dim]:
            pre *= s
        post = 1
        for s in shape[dim + 1:]:
            post *= s
        y = _l2_normalize_middle(x.reshape(pre, shape[dim], post))
        return y.reshape(shape)


def _reference(x, dim=-1):
    xf = x.astype(jnp.float32)
    ss = jnp.sum(xf * xf, axis=dim, keepdims=True)
    denom = jnp.maximum(jnp.sqrt(ss), _EPS)
    return (xf / denom).astype(x.dtype)


if __name__ == "__main__":
    key = jax.random.PRNGKey(0)
    k1, k2, k3, k4 = jax.random.split(key, 4)

    mod = L2Norm(dim=-1)

    # Case 1: small, lane-dense hidden dim (batch=2, seq=8, hidden=256).
    x1 = jax.random.normal(k1, (2, 8, 256), dtype=jnp.float32)
    y1 = mod(x1)
    jax.block_until_ready(y1)
    assert y1.shape == x1.shape and y1.dtype == x1.dtype
    assert jnp.allclose(y1, _reference(x1), atol=1e-6, rtol=1e-5)

    # Case 2: ragged row count (150 rows) with a forced small tile so the
    # cdiv grid + masked partial last block path is exercised.
    x2 = jax.random.normal(k2, (3, 50, 384), dtype=jnp.float32)
    y2 = mod(x2, max_tile_rows=64)
    jax.block_until_ready(y2)
    assert y2.shape == x2.shape and y2.dtype == x2.dtype
    assert jnp.allclose(y2, _reference(x2), atol=1e-6, rtol=1e-5)

    # Case 3: bf16 input (exercises the in-dtype scale-multiply path).
    x3 = jax.random.normal(k3, (4, 16, 128), dtype=jnp.bfloat16)
    y3 = mod(x3)
    jax.block_until_ready(y3)
    assert y3.shape == x3.shape and y3.dtype == jnp.bfloat16
    assert jnp.allclose(y3.astype(jnp.float32),
                        _reference(x3).astype(jnp.float32),
                        atol=2e-2, rtol=2e-2)

    # Case 4: non-last-dim normalization (fused sublane-reduction kernel).
    x4 = jax.random.normal(k4, (2, 6, 64), dtype=jnp.float32)
    y4 = L2Norm(dim=1)(x4)
    jax.block_until_ready(y4)
    assert y4.shape == x4.shape and y4.dtype == x4.dtype
    assert jnp.allclose(y4, _reference(x4, dim=1), atol=1e-6, rtol=1e-5)

    print("KERNEL_OK")
</pallas_src>

<mosaic_0001>
module attributes {stable_mosaic.version = 11 : i64} {
  func.func @_l2norm_kernel(%arg0: i32, %arg1: memref<8x256xf32, #tpu.memory_space<vmem>>, %arg2: memref<8x256xf32, #tpu.memory_space<vmem>>) attributes {dimension_semantics = [#tpu.dimension_semantics<parallel>], iteration_bounds = array<i64: 2>, scalar_prefetch = 0 : i64, scratch_operands = 0 : i64, tpu.core_type = #tpu.core_type<tc>, window_params = [{transform_indices = @transform_0, window_bounds = array<i64: 8, 256>}, {transform_indices = @transform_1, window_bounds = array<i64: 8, 256>}]} {
    %c0 = arith.constant 0 : index
    %c0_0 = arith.constant 0 : index
    %0 = vector.load %arg1[%c0, %c0_0] : memref<8x256xf32, #tpu.memory_space<vmem>>, vector<8x256xf32>
    %1 = arith.mulf %0, %0 : vector<8x256xf32>
    %cst = arith.constant dense<0.000000e+00> : vector<8xf32>
    %2 = vector.multi_reduction <add>, %1, %cst [1] : vector<8x256xf32> to vector<8xf32>
    %3 = vector.shape_cast %2 : vector<8xf32> to vector<8x1xf32>
    %cst_1 = arith.constant 1.000000e-24 : f32
    %4 = vector.broadcast %cst_1 : f32 to vector<8x1xf32>
    %5 = arith.maximumf %3, %4 : vector<8x1xf32>
    %6 = math.rsqrt %5 : vector<8x1xf32>
    %7 = vector.broadcast %6 : vector<8x1xf32> to vector<8x256xf32>
    %8 = arith.mulf %0, %7 : vector<8x256xf32>
    %c0_2 = arith.constant 0 : index
    %c0_3 = arith.constant 0 : index
    %9 = vector.load %arg2[%c0_2, %c0_3] : memref<8x256xf32, #tpu.memory_space<vmem>>, vector<8x256xf32>
    tpu.vector_store %arg2[%c0_2, %c0_3], %8 {strides = array<i32>} : memref<8x256xf32, #tpu.memory_space<vmem>>, vector<8x256xf32>,
    return
  }
  func.func @transform_0(%arg0: i32) -> (i32, i32) {
    %c0_i32 = arith.constant 0 : i32
    %c0_i32_0 = arith.constant 0 : i32
    return %arg0, %c0_i32 : i32, i32
  }
  func.func @transform_1(%arg0: i32) -> (i32, i32) {
    %c0_i32 = arith.constant 0 : i32
    %c0_i32_0 = arith.constant 0 : i32
    return %arg0, %c0_i32 : i32, i32
  }
}

</mosaic_0001>

<llo_original>
// kernel: tpu_custom_call.1
$region0: #{tpu_custom_call.1}
  #allocation0 [shape = 'u32[]', space=smem, size = 0x4, offset = 0x4, fixed_abs, tag = 'smem constant byte address 0x4 - core index']
  #allocation1 [shape = 'u32[144,128]{1,0:T(1,128)}', space=vmem, size = 0x12000, scoped, tag = 'internal scratch']
  %s0 = inlined_call_operand.hbm [shape: f32[16,256], index: 0, kind: input, shape index: {}]
  %s1 = inlined_call_operand.hbm [shape: f32[16,256], index: 1, kind: output, shape index: {}]
  %s2 = sld [smem:[#allocation0]]
  $region41: #{tpu_custom_call.1} parent=0
    _
  %s4 = ssub.s32 1, %s2
  %s5 = scalar_select 0, %s4, %s2
  $region1: #{tpu_custom_call.1} parent=0
    #allocation2 [shape = 'u8[16384]{0}', space=vmem, size = 0x4000, scoped, tag = 'input window, operand 0']
    #allocation3 [shape = 's32[2]{0}', space=sflag, size = 0x8, scoped, tag = 'scoped memory for tpu_custom_call.1']
    #allocation4 [shape = 's32[2]{0}', space=sflag, size = 0x8, scoped, tag = 'scoped memory for tpu_custom_call.1']
    #allocation5 [shape = 'u8[16384]{0}', space=vmem, size = 0x4000, scoped, tag = 'output window, operand 0']
    %6 = vsyncpa [#allocation3], 0
    %s7 = scalar_lea.sflag [#allocation3], 1
    %8 = vsyncpa %s7, 0
    %9 = vsyncpa [#allocation4], 0
    %s10 = scalar_lea.sflag [#allocation4], 1
    %11 = vsyncpa %s10, 0
    loop: start=0, step=1, limit=4
    $region2: #{tpu_custom_call.1} parent=1 // loop_pre_header
      _
    $region3: #{tpu_custom_call.1} parent=1 // loop_header
      %s13 = sphi 0, %s17
      %p14 = scmp.ge.s32.totalorder %s13, 4
      %s23 = sphi 0, %s25
      %s26 = sphi 0, %s23
      %s27 = sphi 0, %s26
      %s43 = sphi 0, %s27
      %s49 = sphi 0, %s51
      %s52 = sphi 0, %s49
      %s53 = sphi 0, %s52
      %s69 = sphi 0, %s53
    $region4: #{tpu_custom_call.1} parent=1 // loop_header_branch
      %16 = sbr.rel (%p14) target = $region8
    $region5: #{tpu_custom_call.1} parent=1 // loop_body
      %s18 = ssub.s32 %s13, 1
      %s19 = ssub.s32 %s13, 2
      %s20 = sadd.s32 %s13, 1
      %s21 = ssub.s32 %s13, %s20
      %p22 = scmp.eq.s32.totalorder %s21, 0
      %s24 = sadd.s32 %s23, 1
      %s25 = scalar_select %p22, %s23, %s24
      %p28 = pneg %p22
      %p29 = scmp.eq.s32.totalorder %s13, 1
      %p30 = por %p28, %p29
      %p31 = scmp.ne.s32.totalorder %s23, %s26
      %p32 = scmp.eq.s32.totalorder %s13, 0
      %p33 = por %p31, %p32
      %p34 = scmp.ne.s32.totalorder %s23, %s26
      %p35 = scmp.eq.s32.totalorder %s18, 1
      %p36 = por %p34, %p35
      %p37 = scmp.ne.s32.totalorder %s26, %s27
      %p38 = scmp.eq.s32.totalorder %s18, 0
      %p39 = por %p37, %p38
      %p40 = scmp.ne.s32.totalorder %s26, %s27
      %p41 = scmp.eq.s32.totalorder %s19, 1
      %p42 = por %p40, %p41
      %p44 = scmp.ne.s32.totalorder %s27, %s43
      %p45 = scmp.eq.s32.totalorder %s19, 0
      %p46 = por %p44, %p45
      %s47 = ssub.s32 %s13, %s20
      %p48 = scmp.eq.s32.totalorder %s47, 0
      %s50 = sadd.s32 %s49, 1
      %s51 = scalar_select %p48, %s49, %s50
      %p54 = pneg %p48
      %p55 = scmp.eq.s32.totalorder %s13, 1
      %p56 = por %p54, %p55
      %p57 = scmp.ne.s32.totalorder %s49, %s52
      %p58 = scmp.eq.s32.totalorder %s13, 0
      %p59 = por %p57, %p58
      %p60 = scmp.ne.s32.totalorder %s49, %s52
      %p61 = scmp.eq.s32.totalorder %s18, 1
      %p62 = por %p60, %p61
      %p63 = scmp.ne.s32.totalorder %s52, %s53
      %p64 = scmp.eq.s32.totalorder %s18, 0
      %p65 = por %p63, %p64
      %p66 = scmp.ne.s32.totalorder %s52, %s53
      %p67 = scmp.eq.s32.totalorder %s19, 1
      %p68 = por %p66, %p67
      %p70 = scmp.ne.s32.totalorder %s53, %s69
      %p71 = scmp.eq.s32.totalorder %s19, 0
      %p72 = por %p70, %p71
      %p73 = scmp.le.s32.totalorder 1, %s13
      %p74 = scmp.lt.s32.totalorder %s13, 3
      %p75 = pnand %p73, %p74
      %p76 = pneg %p75
      // Predicated region
      $region9: #{tpu_custom_call.1} parent=5 // pred_check
        _
      $region10: #{tpu_custom_call.1} parent=5 // pred_check_branch
        %78 = sbr.rel (%p75) target = $region12
      $region11: #{tpu_custom_call.1} parent=5 // pred_region
        %s79 = ssub.s32 %s13, 1
      $region12: #{tpu_custom_call.1} parent=5 // pred_fallthru
        _
      %p80 = scmp.lt.s32.totalorder %s13, 2
      // Predicated region
      $region13: #{tpu_custom_call.1} parent=5 // pred_check
        %p81 = pneg %p80
      $region14: #{tpu_custom_call.1} parent=5 // pred_check_branch
        %83 = sbr.rel (%p81) target = $region16
      $region15: #{tpu_custom_call.1} parent=5 // pred_region
        // Predicated region
        $region17: #{tpu_custom_call.1} parent=15 // pred_check
          %p84 = pneg %p33
        $region18: #{tpu_custom_call.1} parent=15 // pred_check_branch
          %86 = sbr.rel (%p84) target = $region20
        $region19: #{tpu_custom_call.1} parent=15 // pred_region
          %s87 = sand.u32 %s23, 1
          %s88 = scalar_lea.sflag [#allocation3], %s87
          %s89 = sand.u32 %s23, 1
          %s90 = smul.addr %s89, 16
          %s91 = scalar_lea.vmem [#allocation2], %s90
          %s93 = ssub.s32 256, 256
          %94 = vsyncadd %s88, %s93
          %s95 = smul.addr %s13, 2
          %s96 = smul.addr %s95, 128
          %s97 = scalar_lea.hbm %s0, %s96
          %s99 = sshll.u32 %s91, 4
          %s100 = int_to_ptr.vmem [resolvable:$true] %s99
          %102 = dma.hbm_to_vmem [thread:$0]  %s97, 256, %s100, %s88
        $region20: #{tpu_custom_call.1} parent=15 // pred_fallthru
          _
      $region16: #{tpu_custom_call.1} parent=5 // pred_fallthru
        _
      %p103 = scmp.le.s32.totalorder 1, %s13
      %p104 = scmp.lt.s32.totalorder %s13, 3
      %p105 = pnand %p103, %p104
      %p106 = pneg %p105
      // Predicated region
      $region21: #{tpu_custom_call.1} parent=5 // pred_check
        _
      $region22: #{tpu_custom_call.1} parent=5 // pred_check_branch
        %108 = sbr.rel (%p105) target = $region24
      $region23: #{tpu_custom_call.1} parent=5 // pred_region
        %s109 = ssub.s32 %s13, 1
        %s110 = sand.u32 %s26, 1
        %s111 = scalar_lea.sflag [#allocation3], %s110
        %s112 = sand.u32 %s26, 1
        %s113 = smul.addr %s112, 16
        %s114 = scalar_lea.vmem [#allocation2], %s113
        // Predicated region
        $region25: #{tpu_custom_call.1} parent=23 // pred_check
          %p115 = pneg %p39
        $region26: #{tpu_custom_call.1} parent=23 // pred_check_branch
          %117 = sbr.rel (%p115) target = $region28
        $region27: #{tpu_custom_call.1} parent=23 // pred_region
          %118 = dma.done %s111, 256
        $region28: #{tpu_custom_call.1} parent=23 // pred_fallthru
          _
        %s119 = sand.u32 %s26, 1
        %s120 = scalar_lea.sflag [#allocation3], %s119
        %s121 = sand.u32 %s26, 1
        %s122 = smul.addr %s121, 16
        %s123 = scalar_lea.vmem [#allocation2], %s122
        %p124 = pneg %p39
        %p125 = pneg %p36
        %p126 = pneg %p65
        %p127 = pneg %p62
        %s128 = sand.u32 %s52, 1
        %s129 = scalar_lea.sflag [#allocation4], %s128
        %s130 = sand.u32 %s52, 1
        %s131 = smul.addr %s130, 16
        %s132 = scalar_lea.vmem [#allocation5], %s131
        %v133 = vld [vmem:[%s114] sm:$0xff]
        %v134 = vld [vmem:[%s114 + $0x8] sm:$0xff]
        %v135 = vmul.f32 %v133, %v133
        %v136 = vmul.f32 %v134, %v134
        %v137 = vadd.f32 %v135, %v136
        %138 = vadd.xlane.f32.xlu0 %v137
        %v139 = vpop.xlane.xlu0 %138
        %v140 = vmax.f32 %v139, 1e-24
        %v141 = vrsqrt.pop %v140
        %v142 = vmul.f32 %v133, %v141
        %v143 = vmul.f32 %v134, %v141
        %144 = vst [vmem:[%s132] sm:$0xff] %v142
        %145 = vst [vmem:[%s132 + $0x8] sm:$0xff] %v143
        %s146 = sand.u32 %s52, 1
        %s147 = scalar_lea.sflag [#allocation4], %s146
        %s148 = sand.u32 %s52, 1
        %s149 = smul.addr %s148, 16
        %s150 = scalar_lea.vmem [#allocation5], %s149
        // Predicated region
        $region29: #{tpu_custom_call.1} parent=23 // pred_check
          %p151 = pneg %p62
        $region30: #{tpu_custom_call.1} parent=23 // pred_check_branch
          %153 = sbr.rel (%p151) target = $region32
        $region31: #{tpu_custom_call.1} parent=23 // pred_region
          %s155 = ssub.s32 256, 256
          %156 = vsyncadd %s147, %s155
          %s157 = smul.addr %s18, 2
          %s158 = smul.addr %s157, 128
          %s159 = scalar_lea.hbm %s1, %s158
          %s161 = sshll.u32 %s150, 4
          %s162 = int_to_ptr.vmem [resolvable:$true] %s161
          %164 = dma.vmem_to_hbm [thread:$0]  %s162, 256, %s159, %s147
        $region32: #{tpu_custom_call.1} parent=23 // pred_fallthru
          _
      $region24: #{tpu_custom_call.1} parent=5 // pred_fallthru
        _
      %p165 = scmp.le.s32.totalorder 2, %s13
      // Predicated region
      $region33: #{tpu_custom_call.1} parent=5 // pred_check
        %p166 = pneg %p165
      $region34: #{tpu_custom_call.1} parent=5 // pred_check_branch
        %168 = sbr.rel (%p166) target = $region36
      $region35: #{tpu_custom_call.1} parent=5 // pred_region
        %s169 = ssub.s32 %s13, 2
        // Predicated region
        $region37: #{tpu_custom_call.1} parent=35 // pred_check
          %p170 = pneg %p68
        $region38: #{tpu_custom_call.1} parent=35 // pred_check_branch
          %172 = sbr.rel (%p170) target = $region40
        $region39: #{tpu_custom_call.1} parent=35 // pred_region
          %s173 = sand.u32 %s53, 1
          %s174 = scalar_lea.sflag [#allocation4], %s173
          %s175 = sand.u32 %s53, 1
          %s176 = smul.addr %s175, 16
          %s177 = scalar_lea.vmem [#allocation5], %s176
          %178 = dma.done %s174, 256
        $region40: #{tpu_custom_call.1} parent=35 // pred_fallthru
          _
      $region36: #{tpu_custom_call.1} parent=5 // pred_fallthru
        _
    $region6: #{tpu_custom_call.1} parent=1 // loop_footer
      %s17 = sadd.s32 1, %s13
    $region7: #{tpu_custom_call.1} parent=1 // loop_footer_branch
      %12 = sbr.rel target = $region3
    $region8: #{tpu_custom_call.1} parent=1 // loop_exit
      _
    %179 = vsyncpa [#allocation3], 1
    %s180 = scalar_lea.sflag [#allocation3], 1
    %181 = vsyncpa %s180, 1
    %182 = vsyncpa [#allocation4], 1
    %s183 = scalar_lea.sflag [#allocation4], 1
    %184 = vsyncpa %s183, 1

</llo_original>
